<compile_context>
chip_gen: v7x
topology: tpu7x:2x2x1
jax: 0.10.0
libtpu: 0.0.40
codegen_flags: <defaults>
</compile_context>

<pallas_src>
import jax
import jax.numpy as jnp
from jax.experimental import pallas as pl
from jax.experimental.pallas import tpu as pltpu


def _round_up(x, m):
    return ((x + m - 1) // m) * m


def _iht_tiles(ht_size, im_size, *, tn_max=512, tk_max=512):
    """Deterministic tile sizes / padded dims from the Hough / image sizes."""
    HT = ht_size[0] * ht_size[1]
    IM = im_size[0] * im_size[1]
    tn = min(_round_up(IM, 256), tn_max)
    tk = min(_round_up(HT, 256), tk_max)
    return tn, tk, _round_up(HT, tk), _round_up(IM, tn)


# ---------------------------------------------------------------------------
# Pallas kernel: tiled matmul  out[M, IM] = x[M, HT] @ V[HT, IM]
#   grid = (M//tm, IM//tn, HT//tk);  k (Hough reduction) is the last axis.
#   Output tile is resident across k -> accumulate directly into o_ref (f32).
# ---------------------------------------------------------------------------
def _iht_matmul_kernel(x_ref, v_ref, o_ref):
    @pl.when(pl.program_id(2) == 0)
    def _():
        o_ref[...] = jnp.zeros_like(o_ref)

    o_ref[...] += jnp.dot(
        x_ref[...], v_ref[...], preferred_element_type=jnp.float32
    )


def _iht_matmul(x_flat, vote_matrix, *, tm, tn, tk):
    M, HT = x_flat.shape
    HT2, IM = vote_matrix.shape
    assert HT == HT2
    # Dims are pre-padded by the caller to tile multiples.
    assert M % tm == 0 and IM % tn == 0 and HT % tk == 0

    grid = (M // tm, IM // tn, HT // tk)

    bytes_accessed = (
        M * HT * jnp.dtype(x_flat.dtype).itemsize
        + HT * IM * jnp.dtype(vote_matrix.dtype).itemsize
        + M * IM * 4
    )

    return pl.pallas_call(
        _iht_matmul_kernel,
        out_shape=jax.ShapeDtypeStruct((M, IM), jnp.float32),
        grid_spec=pltpu.PrefetchScalarGridSpec(
            num_scalar_prefetch=0,
            grid=grid,
            in_specs=[
                pl.BlockSpec((tm, tk), lambda i, j, k: (i, k)),
                pl.BlockSpec((tk, tn), lambda i, j, k: (k, j)),
            ],
            out_specs=pl.BlockSpec((tm, tn), lambda i, j, k: (i, j)),
        ),
        compiler_params=pltpu.CompilerParams(
            dimension_semantics=("parallel", "parallel", "arbitrary"),
        ),
        cost_estimate=pl.CostEstimate(
            flops=2 * M * HT * IM,
            transcendentals=0,
            bytes_accessed=bytes_accessed,
        ),
    )(x_flat, vote_matrix)


# ---------------------------------------------------------------------------
# Init-time: densify the sparse vote mapping into V[HT, IM], narrow to bf16,
# and pre-pad it to tile multiples.  All of this is done once (module
# __init__ equivalent) and is completely off the forward hot path.
# ---------------------------------------------------------------------------
def build_vote_matrix(
    vote_mapping, im_size, ht_size, dtype=jnp.bfloat16, *, tn_max=512, tk_max=512
):
    IM = im_size[0] * im_size[1]
    HT = ht_size[0] * ht_size[1]
    im_idx = vote_mapping[:, 0].astype(jnp.int32)
    ht_idx = vote_mapping[:, 1].astype(jnp.int32)
    w = vote_mapping[:, 2].astype(jnp.float32)
    V = jnp.zeros((HT, IM), dtype=jnp.float32).at[ht_idx, im_idx].add(w)
    V = V.astype(dtype)
    _, _, HT_pad, IM_pad = _iht_tiles(ht_size, im_size, tn_max=tn_max, tk_max=tk_max)
    return jnp.pad(V, ((0, HT_pad - HT), (0, IM_pad - IM)))


# ---------------------------------------------------------------------------
# Module-equivalent forward.  `vote_matrix` is the prebuilt (padded) V.
# ---------------------------------------------------------------------------
def iht_forward(
    x,
    vote_matrix,
    im_size,
    ht_size,
    *,
    tm_max=512,
    tn_max=512,
    tk_max=512,
    compute_dtype=jnp.bfloat16,
):
    B, C, ht_h, ht_w = x.shape
    assert (ht_h, ht_w) == tuple(ht_size)
    IM = im_size[0] * im_size[1]
    HT = ht_h * ht_w
    M = B * C

    tn, tk, HT_pad, IM_pad = _iht_tiles(ht_size, im_size, tn_max=tn_max, tk_max=tk_max)
    assert vote_matrix.shape == (HT_pad, IM_pad), (
        "vote_matrix must be built with build_vote_matrix (same tn/tk caps)"
    )

    # tm covers as much of (bf16-packed) M as possible so V is streamed the
    # minimum number of times.
    M16 = _round_up(M, 16)
    tm = min(M16, tm_max)
    M_pad = _round_up(M16, tm)

    x_flat = x.reshape(M, HT).astype(compute_dtype)
    x_flat = jnp.pad(x_flat, ((0, M_pad - M), (0, HT_pad - HT)))
    V = vote_matrix.astype(compute_dtype)

    out_flat = _iht_matmul(x_flat, V, tm=tm, tn=tn, tk=tk)
    out = out_flat[:M, :IM].astype(x.dtype)
    return out.reshape(B, C, im_size[0], im_size[1])

    # TODO(synk): exploit V sparsity (per-j list of nonzero k blocks via
    # PrefetchScalarGridSpec scalar prefetch) to skip all-zero V tiles.


# ---------------------------------------------------------------------------
# Pure-JAX references for correctness checks
# ---------------------------------------------------------------------------
def iht_reference_f32(x, vote_mapping, im_size, ht_size):
    B, C, ht_h, ht_w = x.shape
    IM = im_size[0] * im_size[1]
    HT = ht_h * ht_w
    im_idx = vote_mapping[:, 0].astype(jnp.int32)
    ht_idx = vote_mapping[:, 1].astype(jnp.int32)
    w = vote_mapping[:, 2].astype(jnp.float32)
    V = jnp.zeros((HT, IM), dtype=jnp.float32).at[ht_idx, im_idx].add(w)
    out = x.reshape(B * C, HT).astype(jnp.float32) @ V
    return out.reshape(B, C, im_size[0], im_size[1])


def iht_reference_bf16(x, vote_matrix_padded, im_size, ht_size):
    B, C, ht_h, ht_w = x.shape
    HT = ht_h * ht_w
    IM = im_size[0] * im_size[1]
    V = vote_matrix_padded[:HT, :IM]
    out = jnp.dot(
        x.reshape(B * C, HT).astype(jnp.bfloat16),
        V.astype(jnp.bfloat16),
        preferred_element_type=jnp.float32,
    )
    return out.reshape(B, C, im_size[0], im_size[1]).astype(x.dtype)


if __name__ == "__main__":
    key = jax.random.PRNGKey(0)
    k_x, k_im, k_ht, k_w = jax.random.split(key, 4)

    # Small, module-consistent shapes.
    B, C = 2, 4
    im_size = (16, 16)   # image space  -> IM = 256
    ht_size = (16, 16)   # Hough space  -> HT = 256
    n_votes = 2048

    IM = im_size[0] * im_size[1]
    HT = ht_size[0] * ht_size[1]

    # Deterministic synthetic vote_mapping (no checkpoint load).
    im_idx = jax.random.randint(k_im, (n_votes,), 0, IM)
    ht_idx = jax.random.randint(k_ht, (n_votes,), 0, HT)
    weights = jax.random.uniform(k_w, (n_votes,), dtype=jnp.float32)
    vote_mapping = jnp.stack(
        [im_idx.astype(jnp.float32), ht_idx.astype(jnp.float32), weights], axis=1
    )

    # Init-time: build the dense, padded vote matrix once.
    vote_matrix = build_vote_matrix(vote_mapping, im_size, ht_size)

    # Input in Hough space, NCHW.
    x = jax.random.normal(k_x, (B, C, ht_size[0], ht_size[1]), dtype=jnp.float32)

    fwd = jax.jit(
        lambda x, v: iht_forward(x, v, im_size, ht_size)
    )
    out = fwd(x, vote_matrix)
    out = jax.block_until_ready(out)
    assert out.shape == (B, C, im_size[0], im_size[1])

    # Tight check vs a bf16-input / f32-accumulate reference (same math path).
    ref_bf16 = iht_reference_bf16(x, vote_matrix, im_size, ht_size)
    assert jnp.allclose(out, ref_bf16, atol=1e-2, rtol=1e-2), (
        "Pallas IHT mismatch vs bf16 reference"
    )

    # Looser check vs the full-f32 reference (bf16 inputs -> ~1e-2 rel error).
    ref_f32 = iht_reference_f32(x, vote_mapping, im_size, ht_size)
    assert jnp.allclose(out, ref_f32, atol=1e-1, rtol=5e-2), (
        "Pallas IHT mismatch vs f32 reference"
    )

    print("KERNEL_OK")
</pallas_src>

<mosaic_0001>
module attributes {stable_mosaic.version = 11 : i64} {
  func.func @_iht_matmul_kernel(%arg0: i32, %arg1: i32, %arg2: i32, %arg3: memref<16x256xbf16, #tpu.memory_space<vmem>>, %arg4: memref<256x256xbf16, #tpu.memory_space<vmem>>, %arg5: memref<16x256xf32, #tpu.memory_space<vmem>>) attributes {dimension_semantics = [#tpu.dimension_semantics<parallel>, #tpu.dimension_semantics<parallel>, #tpu.dimension_semantics<arbitrary>], iteration_bounds = array<i64: 1, 1, 1>, scalar_prefetch = 0 : i64, scratch_operands = 0 : i64, tpu.core_type = #tpu.core_type<tc>, window_params = [{transform_indices = @transform_0, window_bounds = array<i64: 16, 256>}, {transform_indices = @transform_1, window_bounds = array<i64: 256, 256>}, {transform_indices = @transform_2, window_bounds = array<i64: 16, 256>}]} {
    %c0_i32 = arith.constant 0 : i32
    %0 = arith.cmpi eq, %arg2, %c0_i32 : i32
    %1 = arith.extui %0 : i1 to i32
    %c0_i32_0 = arith.constant 0 : i32
    %2 = arith.cmpi ne, %1, %c0_i32_0 : i32
    scf.if %2 {
      %cst_8 = arith.constant 0.000000e+00 : f32
      %9 = vector.broadcast %cst_8 : f32 to vector<16x256xf32>
      %c0_9 = arith.constant 0 : index
      %c0_10 = arith.constant 0 : index
      %10 = vector.load %arg5[%c0_9, %c0_10] : memref<16x256xf32, #tpu.memory_space<vmem>>, vector<16x256xf32>
      tpu.vector_store %arg5[%c0_9, %c0_10], %9 {strides = array<i32>} : memref<16x256xf32, #tpu.memory_space<vmem>>, vector<16x256xf32>,
    } else {
    }
    %c0 = arith.constant 0 : index
    %c0_1 = arith.constant 0 : index
    %3 = vector.load %arg5[%c0, %c0_1] : memref<16x256xf32, #tpu.memory_space<vmem>>, vector<16x256xf32>
    %c0_2 = arith.constant 0 : index
    %c0_3 = arith.constant 0 : index
    %4 = vector.load %arg3[%c0_2, %c0_3] : memref<16x256xbf16, #tpu.memory_space<vmem>>, vector<16x256xbf16>
    %c0_4 = arith.constant 0 : index
    %c0_5 = arith.constant 0 : index
    %5 = vector.load %arg4[%c0_4, %c0_5] : memref<256x256xbf16, #tpu.memory_space<vmem>>, vector<256x256xbf16>
    %cst = arith.constant dense<0.000000e+00> : vector<16x256xf32>
    %6 = tpu.matmul %4, %5, %cst {dimension_numbers = #tpu.dot_dimension_numbers<[1], [0], [0], [1], [0, 0, 1, 1], [], []>} : vector<16x256xbf16>, vector<256x256xbf16>, vector<16x256xf32> -> vector<16x256xf32>
    %7 = arith.addf %3, %6 : vector<16x256xf32>
    %c0_6 = arith.constant 0 : index
    %c0_7 = arith.constant 0 : index
    %8 = vector.load %arg5[%c0_6, %c0_7] : memref<16x256xf32, #tpu.memory_space<vmem>>, vector<16x256xf32>
    tpu.vector_store %arg5[%c0_6, %c0_7], %7 {strides = array<i32>} : memref<16x256xf32, #tpu.memory_space<vmem>>, vector<16x256xf32>,
    return
  }
  func.func @transform_0(%arg0: i32, %arg1: i32, %arg2: i32) -> (i32, i32) {
    %c0_i32 = arith.constant 0 : i32
    return %arg0, %arg2 : i32, i32
  }
  func.func @transform_1(%arg0: i32, %arg1: i32, %arg2: i32) -> (i32, i32) {
    %c0_i32 = arith.constant 0 : i32
    return %arg2, %arg1 : i32, i32
  }
  func.func @transform_2(%arg0: i32, %arg1: i32, %arg2: i32) -> (i32, i32) {
    %c0_i32 = arith.constant 0 : i32
    return %arg0, %arg1 : i32, i32
  }
}

</mosaic_0001>

<llo_original>
// kernel: _lambda_.1
$region0: #{_lambda_.1}
  #allocation0 [shape = 'u32[]', space=smem, size = 0x4, offset = 0x4, fixed_abs, tag = 'smem constant byte address 0x4 - core index']
  #allocation1 [shape = 'u32[144,128]{1,0:T(1,128)}', space=vmem, size = 0x12000, scoped, tag = 'internal scratch']
  %s0 = inlined_call_operand.vmem [shape: bf16[16,256], index: 0, kind: input, shape index: {}]
  %s1 = inlined_call_operand.vmem [shape: bf16[256,256], index: 1, kind: input, shape index: {}]
  %s2 = inlined_call_operand.vmem [shape: f32[16,256], index: 2, kind: output, shape index: {}]
  %s3 = sld [smem:[#allocation0]]
  $region22: #{_lambda_.1} parent=0
    _
  %s5 = ssub.s32 1, %s3
  %s6 = scalar_select 0, %s5, %s3
  // Predicated region
  $region2: #{_lambda_.1} parent=0 // pred_check
    _
  $region3: #{_lambda_.1} parent=0 // pred_check_branch
    %8 = sbr.rel (0) target = $region5
  $region4: #{_lambda_.1} parent=0 // pred_region
    _
  $region5: #{_lambda_.1} parent=0 // pred_fallthru
    _
  // Predicated region
  $region6: #{_lambda_.1} parent=0 // pred_check
    _
  $region7: #{_lambda_.1} parent=0 // pred_check_branch
    %10 = sbr.rel (0) target = $region9
  $region8: #{_lambda_.1} parent=0 // pred_region
    _
  $region9: #{_lambda_.1} parent=0 // pred_fallthru
    _
  %p11 = scmp.eq.s32.totalorder 0, 0
  // Predicated region
  $region10: #{_lambda_.1} parent=0 // pred_check
    %p12 = pneg %p11
  $region11: #{_lambda_.1} parent=0 // pred_check_branch
    %14 = sbr.rel (%p12) target = $region13
  $region12: #{_lambda_.1} parent=0 // pred_region
    %15 = vst [vmem:[%s2] sm:$0xff] 0.0
    %16 = vst [vmem:[%s2 + $0x8] sm:$0xff] 0.0
    %17 = vst [vmem:[%s2 + $0x10] sm:$0xff] 0.0
    %18 = vst [vmem:[%s2 + $0x18] sm:$0xff] 0.0
  $region13: #{_lambda_.1} parent=0 // pred_fallthru
    _
  %v19 = vld [vmem:[%s2] sm:$0xff]
  %v20 = vld [vmem:[%s2 + $0x8] sm:$0xff]
  %v21 = vld [vmem:[%s2 + $0x10] sm:$0xff]
  %v22 = vld [vmem:[%s2 + $0x18] sm:$0xff]
  %v23 = vld [vmem:[%s0] sm:$0xff]
  %v24 = vld [vmem:[%s0 + $0x8] sm:$0xff]
  %v25 = vld [vmem:[%s1] sm:$0xff]
  %v26 = vld [vmem:[%s1 + $0x8] sm:$0xff]
  %v27 = vld [vmem:[%s1 + $0x10] sm:$0xff]
  %v28 = vld [vmem:[%s1 + $0x18] sm:$0xff]
  %v29 = vld [vmem:[%s1 + $0x20] sm:$0xff]
  %v30 = vld [vmem:[%s1 + $0x28] sm:$0xff]
  %v31 = vld [vmem:[%s1 + $0x30] sm:$0xff]
  %v32 = vld [vmem:[%s1 + $0x38] sm:$0xff]
  %v33 = vld [vmem:[%s1 + $0x40] sm:$0xff]
  %v34 = vld [vmem:[%s1 + $0x48] sm:$0xff]
  %v35 = vld [vmem:[%s1 + $0x50] sm:$0xff]
  %v36 = vld [vmem:[%s1 + $0x58] sm:$0xff]
  %v37 = vld [vmem:[%s1 + $0x60] sm:$0xff]
  %v38 = vld [vmem:[%s1 + $0x68] sm:$0xff]
  %v39 = vld [vmem:[%s1 + $0x70] sm:$0xff]
  %v40 = vld [vmem:[%s1 + $0x78] sm:$0xff]
  %v41 = vld [vmem:[%s1 + $0x80] sm:$0xff]
  %v42 = vld [vmem:[%s1 + $0x88] sm:$0xff]
  %v43 = vld [vmem:[%s1 + $0x90] sm:$0xff]
  %v44 = vld [vmem:[%s1 + $0x98] sm:$0xff]
  %v45 = vld [vmem:[%s1 + $0xa0] sm:$0xff]
  %v46 = vld [vmem:[%s1 + $0xa8] sm:$0xff]
  %v47 = vld [vmem:[%s1 + $0xb0] sm:$0xff]
  %v48 = vld [vmem:[%s1 + $0xb8] sm:$0xff]
  %v49 = vld [vmem:[%s1 + $0xc0] sm:$0xff]
  %v50 = vld [vmem:[%s1 + $0xc8] sm:$0xff]
  %v51 = vld [vmem:[%s1 + $0xd0] sm:$0xff]
  %v52 = vld [vmem:[%s1 + $0xd8] sm:$0xff]
  %v53 = vld [vmem:[%s1 + $0xe0] sm:$0xff]
  %v54 = vld [vmem:[%s1 + $0xe8] sm:$0xff]
  %v55 = vld [vmem:[%s1 + $0xf0] sm:$0xff]
  %v56 = vld [vmem:[%s1 + $0xf8] sm:$0xff]
  %v59 = vunpack.c.l.b16 %v23
  %v60 = vunpack.c.h.b16 %v23
  %v61 = vunpack.c.l.b16 %v24
  %v62 = vunpack.c.h.b16 %v24
  %v63 = vpack.c.b16 %v61, %v59
  %v64 = vpack.c.b16 %v62, %v60
  %v99 = vunpack.c.l.b16 %v25
  %v100 = vunpack.c.h.b16 %v25
  %v101 = vunpack.c.l.b16 %v26
  %v102 = vunpack.c.h.b16 %v26
  %v103 = vunpack.c.l.b16 %v27
  %v104 = vunpack.c.h.b16 %v27
  %v105 = vunpack.c.l.b16 %v28
  %v106 = vunpack.c.h.b16 %v28
  %v107 = vunpack.c.l.b16 %v29
  %v108 = vunpack.c.h.b16 %v29
  %v109 = vunpack.c.l.b16 %v30
  %v110 = vunpack.c.h.b16 %v30
  %v111 = vunpack.c.l.b16 %v31
  %v112 = vunpack.c.h.b16 %v31
  %v113 = vunpack.c.l.b16 %v32
  %v114 = vunpack.c.h.b16 %v32
  %v115 = vunpack.c.l.b16 %v33
  %v116 = vunpack.c.h.b16 %v33
  %v117 = vunpack.c.l.b16 %v34
  %v118 = vunpack.c.h.b16 %v34
  %v119 = vunpack.c.l.b16 %v35
  %v120 = vunpack.c.h.b16 %v35
  %v121 = vunpack.c.l.b16 %v36
  %v122 = vunpack.c.h.b16 %v36
  %v123 = vunpack.c.l.b16 %v37
  %v124 = vunpack.c.h.b16 %v37
  %v125 = vunpack.c.l.b16 %v38
  %v126 = vunpack.c.h.b16 %v38
  %v127 = vunpack.c.l.b16 %v39
  %v128 = vunpack.c.h.b16 %v39
  %v129 = vunpack.c.l.b16 %v40
  %v130 = vunpack.c.h.b16 %v40
  %v131 = vunpack.c.l.b16 %v41
  %v132 = vunpack.c.h.b16 %v41
  %v133 = vunpack.c.l.b16 %v42
  %v134 = vunpack.c.h.b16 %v42
  %v135 = vunpack.c.l.b16 %v43
  %v136 = vunpack.c.h.b16 %v43
  %v137 = vunpack.c.l.b16 %v44
  %v138 = vunpack.c.h.b16 %v44
  %v139 = vunpack.c.l.b16 %v45
  %v140 = vunpack.c.h.b16 %v45
  %v141 = vunpack.c.l.b16 %v46
  %v142 = vunpack.c.h.b16 %v46
  %v143 = vunpack.c.l.b16 %v47
  %v144 = vunpack.c.h.b16 %v47
  %v145 = vunpack.c.l.b16 %v48
  %v146 = vunpack.c.h.b16 %v48
  %v147 = vunpack.c.l.b16 %v49
  %v148 = vunpack.c.h.b16 %v49
  %v149 = vunpack.c.l.b16 %v50
  %v150 = vunpack.c.h.b16 %v50
  %v151 = vunpack.c.l.b16 %v51
  %v152 = vunpack.c.h.b16 %v51
  %v153 = vunpack.c.l.b16 %v52
  %v154 = vunpack.c.h.b16 %v52
  %v155 = vunpack.c.l.b16 %v53
  %v156 = vunpack.c.h.b16 %v53
  %v157 = vunpack.c.l.b16 %v54
  %v158 = vunpack.c.h.b16 %v54
  %v159 = vunpack.c.l.b16 %v55
  %v160 = vunpack.c.h.b16 %v55
  %v161 = vunpack.c.l.b16 %v56
  %v162 = vunpack.c.h.b16 %v56
  %v163 = vpack.c.b16 %v101, %v99
  %v164 = vpack.c.b16 %v102, %v100
  %v165 = vpack.c.b16 %v105, %v103
  %v166 = vpack.c.b16 %v106, %v104
  %v167 = vpack.c.b16 %v109, %v107
  %v168 = vpack.c.b16 %v110, %v108
  %v169 = vpack.c.b16 %v113, %v111
  %v170 = vpack.c.b16 %v114, %v112
  %v171 = vpack.c.b16 %v117, %v115
  %v172 = vpack.c.b16 %v118, %v116
  %v173 = vpack.c.b16 %v121, %v119
  %v174 = vpack.c.b16 %v122, %v120
  %v175 = vpack.c.b16 %v125, %v123
  %v176 = vpack.c.b16 %v126, %v124
  %v177 = vpack.c.b16 %v129, %v127
  %v178 = vpack.c.b16 %v130, %v128
  %v179 = vpack.c.b16 %v133, %v131
  %v180 = vpack.c.b16 %v134, %v132
  %v181 = vpack.c.b16 %v137, %v135
  %v182 = vpack.c.b16 %v138, %v136
  %v183 = vpack.c.b16 %v141, %v139
  %v184 = vpack.c.b16 %v142, %v140
  %v185 = vpack.c.b16 %v145, %v143
  %v186 = vpack.c.b16 %v146, %v144
  %v187 = vpack.c.b16 %v149, %v147
  %v188 = vpack.c.b16 %v150, %v148
  %v189 = vpack.c.b16 %v153, %v151
  %v190 = vpack.c.b16 %v154, %v152
  %v191 = vpack.c.b16 %v157, %v155
  %v192 = vpack.c.b16 %v158, %v156
  %v193 = vpack.c.b16 %v161, %v159
  %v194 = vpack.c.b16 %v162, %v160
  %227 = vmatprep.subr.bf16.mxu0 %v164
  %228 = vmatpush1.bf16.msra.mxu0 %v163
  %229 = vmatprep.subr.bf16.mxu0 %v166
  %230 = vmatpush1.bf16.msra.mxu0 %v165
  %231 = vmatprep.subr.bf16.mxu0 %v168
  %232 = vmatpush1.bf16.msra.mxu0 %v167
  %233 = vmatprep.subr.bf16.mxu0 %v170
  %234 = vmatpush1.bf16.msra.mxu0 %v169
  %235 = vmatprep.subr.bf16.mxu0 %v172
  %236 = vmatpush1.bf16.msra.mxu0 %v171
  %237 = vmatprep.subr.bf16.mxu0 %v174
  %238 = vmatpush1.bf16.msra.mxu0 %v173
  %239 = vmatprep.subr.bf16.mxu0 %v176
  %240 = vmatpush1.bf16.msra.mxu0 %v175
  %241 = vmatprep.subr.bf16.mxu0 %v178
  %242 = vmatpush1.bf16.msra.mxu0 %v177
  %243 = vmatprep.subr.bf16.mxu0 %v180
  %244 = vmatpush1.bf16.msra.mxu0 %v179
  %245 = vmatprep.subr.bf16.mxu0 %v182
  %246 = vmatpush1.bf16.msra.mxu0 %v181
  %247 = vmatprep.subr.bf16.mxu0 %v184
  %248 = vmatpush1.bf16.msra.mxu0 %v183
  %249 = vmatprep.subr.bf16.mxu0 %v186
  %250 = vmatpush1.bf16.msra.mxu0 %v185
  %251 = vmatprep.subr.bf16.mxu0 %v188
  %252 = vmatpush1.bf16.msra.mxu0 %v187
  %253 = vmatprep.subr.bf16.mxu0 %v190
  %254 = vmatpush1.bf16.msra.mxu0 %v189
  %255 = vmatprep.subr.bf16.mxu0 %v192
  %256 = vmatpush1.bf16.msra.mxu0 %v191
  %257 = vmatprep.subr.bf16.mxu0 %v194
  %258 = vmatpush1.bf16.msra.mxu0 %v193
  %259 = vmatprep.mubr.bf16.mxu0 %v64
  %260 = vmatmul.mubr.bf16.gmra.mrb[0].mxu0 %v63
  %v261 = vpop.f32.mrb[0].mxu0
  %v262 = vadd.f32 0.0, %v261
  %v263 = vpop.f32.mrb[0].mxu0
  %v264 = vadd.f32 0.0, %v263
  %v265 = vpop.f32.mrb[0].mxu0
  %v266 = vadd.f32 0.0, %v265
  %v267 = vpop.f32.mrb[0].mxu0
  %v268 = vadd.f32 0.0, %v267
  %269 = vdwg.mxu0
  %v270 = vadd.f32 %v19, %v262
  %v271 = vadd.f32 %v20, %v264
  %v272 = vadd.f32 %v21, %v266
  %v273 = vadd.f32 %v22, %v268
  %274 = vst [vmem:[%s2] sm:$0xff] %v270
  %275 = vst [vmem:[%s2 + $0x8] sm:$0xff] %v271
  %276 = vst [vmem:[%s2 + $0x10] sm:$0xff] %v272
  %277 = vst [vmem:[%s2 + $0x18] sm:$0xff] %v273
  // Predicated region
  $region14: #{_lambda_.1} parent=0 // pred_check
    _
  $region15: #{_lambda_.1} parent=0 // pred_check_branch
    %279 = sbr.rel (0) target = $region17
  $region16: #{_lambda_.1} parent=0 // pred_region
    _
  $region17: #{_lambda_.1} parent=0 // pred_fallthru
    _
  // Predicated region
  $region18: #{_lambda_.1} parent=0 // pred_check
    _
  $region19: #{_lambda_.1} parent=0 // pred_check_branch
    %281 = sbr.rel (0) target = $region21
  $region20: #{_lambda_.1} parent=0 // pred_region
    _
  $region21: #{_lambda_.1} parent=0 // pred_fallthru
    _

</llo_original>
